<compile_context>
chip_gen: v6e
topology: v6e:2x2x1
jax: 0.10.0
libtpu: 0.0.40
codegen_flags: <defaults>
</compile_context>

<pallas_src>
import functools

import jax
import jax.numpy as jnp
from jax import lax
from jax.experimental import pallas as pl
from jax.experimental.pallas import tpu as pltpu

_LANE = 128      # lane width (minor vreg axis)
_SUBLANE = 8     # sublane count (second-minor vreg axis)

# Explicit scoped-VMEM limit: above v5e's 16 MiB default, comfortably inside
# v7x's 64 MiB physical VMEM per TensorCore (and v5e/v6e's 128 MiB).
_VMEM_LIMIT_BYTES = 48 * 1024 * 1024
# Tile-sizing budget: leave headroom below the limit for compiler scratch.
_VMEM_TILE_BUDGET = 40 * 1024 * 1024


def _round_up(x, m):
    return -(-x // m) * m


def _cdiv(a, b):
    return -(-a // b)


def _mlp_kernel(x_ref, w1t_ref, b1_ref, w2_ref, b2_ref, o_ref):
    # Layer 1, computed in transposed orientation so the batch lands on lanes:
    #   h^T = W1^T @ x^T  ->  (H_pad, TB), f32 accumulation.
    # dot_general contracts the LAST dims of both operands, so x is consumed in
    # its natural (TB, in_size) layout — no wrapper-side transpose/pad copy.
    ht = lax.dot_general(
        w1t_ref[...], x_ref[...],
        dimension_numbers=(((1,), (1,)), ((), ())),
        preferred_element_type=jnp.float32,
    )
    ht = jnp.maximum(ht + b1_ref[...], 0.0)            # bias bcast over lanes + ReLU

    # Layer 2 (out_features == 1): VPU multiply + cross-sublane (XLU) reduce.
    # No MXU round trip for a single useful output column.
    z = jnp.sum(ht * w2_ref[...], axis=0, keepdims=True) + b2_ref[0]   # (1, TB)

    # Exact sigmoid: exp on the EUP + exact divide. Neither unit is the
    # bottleneck here, so no approximate reciprocal (correctness feedback).
    o_ref[...] = 1.0 / (1.0 + jnp.exp(-z))


def _choose_batch_tile(batch, in_size, h_pad, block_batch, vmem_budget_bytes):
    """Pick (batch tile, n_blocks) for the 1-D batch grid.

    The x tile arrives as (tb, in_size): with in_size << 128 its VMEM footprint
    is lane-padded to round_up(in_size, 128) lanes (up to 32x its HBM bytes),
    so tb is capped against a VMEM budget rather than raw HBM traffic.
    """
    block_batch = max(_LANE, (block_batch // _LANE) * _LANE)
    b128 = _round_up(batch, _LANE)

    bytes_per_col = (
        2 * 4 * _round_up(in_size, _LANE)   # x tile, double-buffered, lane-padded
        + 2 * 4 * _SUBLANE                  # (1, tb) output, double-buffered
        + 3 * 4 * h_pad                     # (h_pad, tb) f32 layer-1 temporaries
    )
    vmem_cap = max(_LANE, ((vmem_budget_bytes // bytes_per_col) // _LANE) * _LANE)
    max_tb = max(_LANE, min(block_batch, vmem_cap))

    n_blocks = _cdiv(b128, max_tb)
    # Keep >=2 (up to 4) grid steps when the batch allows it: megacore sharding
    # on v7x and a busy prefetch/writeback pipeline. Never force tiles below
    # 2*128 lanes of real work (tiny batches stay a single block).
    n_blocks = max(n_blocks, max(1, min(4, b128 // (2 * _LANE))))
    tb = _round_up(_cdiv(b128, n_blocks), _LANE)    # padding waste < 128 cols/block
    n_blocks = _cdiv(b128, tb)                       # rounding tb up may drop a block
    return tb, n_blocks


@functools.partial(jax.jit, static_argnames=("block_batch",))
def neural_forward(x, w1, b1, w2, b2, *, block_batch=16384):
    """Fused MLP forward. x: (B, in_size) float32 -> (B, 1) float32.

    block_batch is the batch-tile cap (lane columns); sweep 16384..32768 within
    the VMEM budget for large-batch throughput tuning.
    """
    x = x.astype(jnp.float32)
    B, in_size = x.shape
    H = w1.shape[1]
    H_pad = _round_up(H, _SUBLANE)

    tb, n_blocks = _choose_batch_tile(B, in_size, H_pad, block_batch,
                                      _VMEM_TILE_BUDGET)
    B_pad = n_blocks * tb

    # Tiny parameter tensors re-laid out once (a few hundred bytes; negligible).
    w1t = jnp.zeros((H_pad, in_size), jnp.float32).at[:H, :].set(
        w1.T.astype(jnp.float32))
    b1c = jnp.zeros((H_pad, 1), jnp.float32).at[:H, 0].set(
        b1.reshape(-1).astype(jnp.float32))
    w2c = jnp.zeros((H_pad, 1), jnp.float32).at[:H, :].set(w2.astype(jnp.float32))
    b2c = b2.reshape(-1)[:1].astype(jnp.float32)          # (1,) scalar in SMEM

    cost = pl.CostEstimate(
        flops=2 * B * in_size * H + 6 * B * H + 4 * B,
        transcendentals=B,
        bytes_accessed=4 * (B * in_size + B + in_size * H + 2 * H + 1),
    )

    out = pl.pallas_call(
        _mlp_kernel,
        out_shape=jax.ShapeDtypeStruct((1, B_pad), jnp.float32),
        grid=(n_blocks,),
        in_specs=[
            # x in its natural (B, in_size) HBM layout; a partial last block is
            # padded by Pallas, and the padded lanes are sliced off below.
            pl.BlockSpec((tb, in_size), lambda i: (i, 0)),
            # Weights / biases: constant index maps -> resident in VMEM.
            pl.BlockSpec((H_pad, in_size), lambda i: (0, 0)),   # W1^T
            pl.BlockSpec((H_pad, 1), lambda i: (0, 0)),         # b1
            pl.BlockSpec((H_pad, 1), lambda i: (0, 0)),         # w2
            pl.BlockSpec(memory_space=pltpu.SMEM),              # b2 scalar
        ],
        out_specs=pl.BlockSpec((1, tb), lambda i: (0, i)),      # lane-dense out
        compiler_params=pltpu.CompilerParams(
            dimension_semantics=("parallel",),        # megacore sharding on v7x
            vmem_limit_bytes=_VMEM_LIMIT_BYTES,       # > v5e's 16 MiB default
        ),
        cost_estimate=cost,
    )(x, w1t, b1c, w2c, b2c)

    return out[0, :B].reshape(B, 1)


def init_params(key, in_size, hidden_size=8):
    """Deterministic init mimicking PyTorch's nn.Linear (uniform +/-1/sqrt(fan_in))."""
    k1, k2, k3, k4 = jax.random.split(key, 4)
    bound1 = 1.0 / jnp.sqrt(in_size)
    bound2 = 1.0 / jnp.sqrt(hidden_size)
    w1 = jax.random.uniform(k1, (in_size, hidden_size), jnp.float32, -bound1, bound1)
    b1 = jax.random.uniform(k2, (1, hidden_size), jnp.float32, -bound1, bound1)
    w2 = jax.random.uniform(k3, (hidden_size, 1), jnp.float32, -bound2, bound2)
    b2 = jax.random.uniform(k4, (1, 1), jnp.float32, -bound2, bound2)
    return w1, b1, w2, b2


if __name__ == "__main__":
    # Banknote-authentication style input: 4 features, small batch.
    batch, in_size, hidden = 8, 4, 8

    key = jax.random.PRNGKey(0)
    kx, kp, kx2 = jax.random.split(key, 3)
    x = jax.random.normal(kx, (batch, in_size), jnp.float32)
    w1, b1, w2, b2 = init_params(kp, in_size, hidden)

    out = jax.block_until_ready(neural_forward(x, w1, b1, w2, b2))
    ref = jax.nn.sigmoid(jnp.maximum(x @ w1 + b1, 0.0) @ w2 + b2)
    assert out.shape == (batch, 1)
    # Sigmoid is exact now; slack covers default matmul-precision differences
    # between the kernel's MXU path and XLA's reference matmul.
    assert jnp.allclose(out, ref, atol=2e-3), "mismatch vs reference (small batch)"

    # Also exercise the multi-block grid, megacore-parallel axis and the
    # partial-last-block (non-divisible batch) path.
    B2 = 1030
    x2 = jax.random.normal(kx2, (B2, in_size), jnp.float32)
    out2 = jax.block_until_ready(neural_forward(x2, w1, b1, w2, b2))
    ref2 = jax.nn.sigmoid(jnp.maximum(x2 @ w1 + b1, 0.0) @ w2 + b2)
    assert out2.shape == (B2, 1)
    assert jnp.allclose(out2, ref2, atol=2e-3), "mismatch vs reference (tiled batch)"

    print("KERNEL_OK")
</pallas_src>

<mosaic_0001>
module attributes {stable_mosaic.version = 11 : i64} {
  func.func @_mlp_kernel(%arg0: i32, %arg1: memref<128x4xf32, #tpu.memory_space<vmem>>, %arg2: memref<8x4xf32, #tpu.memory_space<vmem>>, %arg3: memref<8x1xf32, #tpu.memory_space<vmem>>, %arg4: memref<8x1xf32, #tpu.memory_space<vmem>>, %arg5: memref<1xf32, #tpu.memory_space<smem>>, %arg6: memref<1x128xf32, #tpu.memory_space<vmem>>) attributes {dimension_semantics = [#tpu.dimension_semantics<parallel>], iteration_bounds = array<i64: 1>, scalar_prefetch = 0 : i64, scratch_operands = 0 : i64, tpu.core_type = #tpu.core_type<tc>, window_params = [{transform_indices = @transform_0, window_bounds = array<i64: 128, 4>}, {pipeline_mode = #tpu.pipeline_mode<synchronous>, transform_indices = @transform_1, window_bounds = array<i64: 8, 4>}, {pipeline_mode = #tpu.pipeline_mode<synchronous>, transform_indices = @transform_2, window_bounds = array<i64: 8, 1>}, {pipeline_mode = #tpu.pipeline_mode<synchronous>, transform_indices = @transform_3, window_bounds = array<i64: 8, 1>}, {transform_indices = @transform_4, window_bounds = array<i64: 1>}, {transform_indices = @transform_5, window_bounds = array<i64: 1, 128>}]} {
    %c0 = arith.constant 0 : index
    %c0_0 = arith.constant 0 : index
    %0 = vector.load %arg2[%c0, %c0_0] : memref<8x4xf32, #tpu.memory_space<vmem>>, vector<8x4xf32>
    %c0_1 = arith.constant 0 : index
    %c0_2 = arith.constant 0 : index
    %1 = vector.load %arg1[%c0_1, %c0_2] : memref<128x4xf32, #tpu.memory_space<vmem>>, vector<128x4xf32>
    %cst = arith.constant dense<0.000000e+00> : vector<8x128xf32>
    %2 = tpu.matmul %0, %1, %cst {dimension_numbers = #tpu.dot_dimension_numbers<[1], [1], [0], [0], [0, 0, 1, 0], [], []>} : vector<8x4xf32>, vector<128x4xf32>, vector<8x128xf32> -> vector<8x128xf32>
    %c0_3 = arith.constant 0 : index
    %c0_4 = arith.constant 0 : index
    %3 = vector.load %arg3[%c0_3, %c0_4] : memref<8x1xf32, #tpu.memory_space<vmem>>, vector<8x1xf32>
    %4 = vector.broadcast %3 : vector<8x1xf32> to vector<8x128xf32>
    %5 = arith.addf %2, %4 : vector<8x128xf32>
    %cst_5 = arith.constant 0.000000e+00 : f32
    %6 = vector.broadcast %cst_5 : f32 to vector<8x128xf32>
    %7 = arith.maximumf %5, %6 : vector<8x128xf32>
    %c0_6 = arith.constant 0 : index
    %c0_7 = arith.constant 0 : index
    %8 = vector.load %arg4[%c0_6, %c0_7] : memref<8x1xf32, #tpu.memory_space<vmem>>, vector<8x1xf32>
    %9 = vector.broadcast %8 : vector<8x1xf32> to vector<8x128xf32>
    %10 = arith.mulf %7, %9 : vector<8x128xf32>
    %cst_8 = arith.constant dense<0.000000e+00> : vector<128xf32>
    %11 = vector.multi_reduction <add>, %10, %cst_8 [0] : vector<8x128xf32> to vector<128xf32>
    %12 = vector.shape_cast %11 : vector<128xf32> to vector<1x128xf32>
    %c0_9 = arith.constant 0 : index
    %13 = memref.load %arg5[%c0_9] : memref<1xf32, #tpu.memory_space<smem>>
    %14 = vector.broadcast %13 : f32 to vector<1x128xf32>
    %15 = arith.addf %12, %14 : vector<1x128xf32>
    %cst_10 = arith.constant 0.000000e+00 : f32
    %16 = vector.broadcast %cst_10 : f32 to vector<1x128xf32>
    %17 = arith.subf %16, %15 : vector<1x128xf32>
    %18 = math.exp %17 : vector<1x128xf32>
    %cst_11 = arith.constant 1.000000e+00 : f32
    %19 = vector.broadcast %cst_11 : f32 to vector<1x128xf32>
    %20 = arith.addf %19, %18 : vector<1x128xf32>
    %cst_12 = arith.constant 1.000000e+00 : f32
    %21 = vector.broadcast %cst_12 : f32 to vector<1x128xf32>
    %22 = arith.divf %21, %20 : vector<1x128xf32>
    %c0_13 = arith.constant 0 : index
    %c0_14 = arith.constant 0 : index
    %23 = vector.load %arg6[%c0_13, %c0_14] : memref<1x128xf32, #tpu.memory_space<vmem>>, vector<1x128xf32>
    tpu.vector_store %arg6[%c0_13, %c0_14], %22 {strides = array<i32>} : memref<1x128xf32, #tpu.memory_space<vmem>>, vector<1x128xf32>,
    return
  }
  func.func @transform_0(%arg0: i32) -> (i32, i32) {
    %c0_i32 = arith.constant 0 : i32
    %c0_i32_0 = arith.constant 0 : i32
    return %arg0, %c0_i32 : i32, i32
  }
  func.func @transform_1(%arg0: i32) -> (i32, i32) {
    %c0_i32 = arith.constant 0 : i32
    %c0_i32_0 = arith.constant 0 : i32
    %c0_i32_1 = arith.constant 0 : i32
    return %c0_i32, %c0_i32_0 : i32, i32
  }
  func.func @transform_2(%arg0: i32) -> (i32, i32) {
    %c0_i32 = arith.constant 0 : i32
    %c0_i32_0 = arith.constant 0 : i32
    %c0_i32_1 = arith.constant 0 : i32
    return %c0_i32, %c0_i32_0 : i32, i32
  }
  func.func @transform_3(%arg0: i32) -> (i32, i32) {
    %c0_i32 = arith.constant 0 : i32
    %c0_i32_0 = arith.constant 0 : i32
    %c0_i32_1 = arith.constant 0 : i32
    return %c0_i32, %c0_i32_0 : i32, i32
  }
  func.func @transform_4(%arg0: i32) -> i32 {
    %c0_i32 = arith.constant 0 : i32
    %c0_i32_0 = arith.constant 0 : i32
    return %c0_i32 : i32
  }
  func.func @transform_5(%arg0: i32) -> (i32, i32) {
    %c0_i32 = arith.constant 0 : i32
    %c0_i32_0 = arith.constant 0 : i32
    return %c0_i32, %arg0 : i32, i32
  }
}

</mosaic_0001>

<llo_original>
// kernel: neural_forward.1
$region0: #{neural_forward.1}
  #allocation0 [shape = 'u32[]', space=smem, size = 0x4, offset = 0x4, fixed_abs, tag = 'smem constant byte address 0x4 - core index']
  #allocation1 [shape = 'u32[144,128]{1,0:T(1,128)}', space=vmem, size = 0x12000, scoped, tag = 'internal scratch']
  #allocation2 [shape = 'f32[1]{0:T(128)S(6)}', space=smem, size = 0x200, scoped, tag = 'scoped memory for neural_forward.1']
  %s0 = inlined_call_operand.vmem [shape: f32[8,4], index: 0, kind: input, shape index: {}]
  %s1 = inlined_call_operand.vmem [shape: f32[8,4], index: 1, kind: input, shape index: {}]
  %s2 = inlined_call_operand.vmem [shape: f32[8,1], index: 2, kind: input, shape index: {}]
  %s3 = inlined_call_operand.vmem [shape: f32[8,1], index: 3, kind: input, shape index: {}]
  %s4 = inlined_call_operand.<no memory space> [shape: f32[1], index: 4, kind: input, shape index: {}]
  %s5 = inlined_call_operand.vmem [shape: f32[1,128], index: 5, kind: output, shape index: {}]
  %s6 = sld [smem:[#allocation0]]
  $region30: #{neural_forward.1} parent=0
    _
  %s8 = ssub.s32 1, %s6
  %s9 = scalar_select 0, %s8, %s6
  %10 = sst [smem:[#allocation2]] %s4
  // Predicated region
  $region2: #{neural_forward.1} parent=0 // pred_check
    _
  $region3: #{neural_forward.1} parent=0 // pred_check_branch
    %12 = sbr.rel (0) target = $region5
  $region4: #{neural_forward.1} parent=0 // pred_region
    _
  $region5: #{neural_forward.1} parent=0 // pred_fallthru
    _
  // Predicated region
  $region6: #{neural_forward.1} parent=0 // pred_check
    _
  $region7: #{neural_forward.1} parent=0 // pred_check_branch
    %14 = sbr.rel (0) target = $region9
  $region8: #{neural_forward.1} parent=0 // pred_region
    _
  $region9: #{neural_forward.1} parent=0 // pred_fallthru
    _
  // Predicated region
  $region10: #{neural_forward.1} parent=0 // pred_check
    _
  $region11: #{neural_forward.1} parent=0 // pred_check_branch
    %16 = sbr.rel (0) target = $region13
  $region12: #{neural_forward.1} parent=0 // pred_region
    _
  $region13: #{neural_forward.1} parent=0 // pred_fallthru
    _
  // Predicated region
  $region14: #{neural_forward.1} parent=0 // pred_check
    _
  $region15: #{neural_forward.1} parent=0 // pred_check_branch
    %18 = sbr.rel (0) target = $region17
  $region16: #{neural_forward.1} parent=0 // pred_region
    _
  $region17: #{neural_forward.1} parent=0 // pred_fallthru
    _
  // Predicated region
  $region18: #{neural_forward.1} parent=0 // pred_check
    _
  $region19: #{neural_forward.1} parent=0 // pred_check_branch
    %20 = sbr.rel (0) target = $region21
  $region20: #{neural_forward.1} parent=0 // pred_region
    _
  $region21: #{neural_forward.1} parent=0 // pred_fallthru
    _
  %v21 = vld [vmem:[%s1] sm:$0xff]
  %v22 = vld [vmem:[%s0] sm:$0xff]
  %v23 = vld [vmem:[%s0 + $0x8] sm:$0xff]
  %v24 = vld [vmem:[%s0 + $0x10] sm:$0xff]
  %v25 = vld [vmem:[%s0 + $0x18] sm:$0xff]
  %v26 = vld [vmem:[%s0 + $0x20] sm:$0xff]
  %v27 = vld [vmem:[%s0 + $0x28] sm:$0xff]
  %v28 = vld [vmem:[%s0 + $0x30] sm:$0xff]
  %v29 = vld [vmem:[%s0 + $0x38] sm:$0xff]
  %v30 = vld [vmem:[%s0 + $0x40] sm:$0xff]
  %v31 = vld [vmem:[%s0 + $0x48] sm:$0xff]
  %v32 = vld [vmem:[%s0 + $0x50] sm:$0xff]
  %v33 = vld [vmem:[%s0 + $0x58] sm:$0xff]
  %v34 = vld [vmem:[%s0 + $0x60] sm:$0xff]
  %v35 = vld [vmem:[%s0 + $0x68] sm:$0xff]
  %v36 = vld [vmem:[%s0 + $0x70] sm:$0xff]
  %v37 = vld [vmem:[%s0 + $0x78] sm:$0xff]
  %v38 = vld [vmem:[%s2] sm:$0xff]
  %40 = vset.pattern.permute.xlu0 0
  %41 = vperm.xlu0 %40, %v38
  %v42 = vpop.permute.xlu0 %41
  %vm44 = vcmask 31744
  %v46 = vsel %vm44, %v21, 0
  %v49 = vsel %vm44, %v22, 0
  %v52 = vsel %vm44, %v23, 0
  %v55 = vsel %vm44, %v24, 0
  %v58 = vsel %vm44, %v25, 0
  %v61 = vsel %vm44, %v26, 0
  %v64 = vsel %vm44, %v27, 0
  %v67 = vsel %vm44, %v28, 0
  %v70 = vsel %vm44, %v29, 0
  %v73 = vsel %vm44, %v30, 0
  %v76 = vsel %vm44, %v31, 0
  %v79 = vsel %vm44, %v32, 0
  %v82 = vsel %vm44, %v33, 0
  %v85 = vsel %vm44, %v34, 0
  %v88 = vsel %vm44, %v35, 0
  %v91 = vsel %vm44, %v36, 0
  %v94 = vsel %vm44, %v37, 0
  %96 = vmatprep.subr.mxu0 0.0
  %97 = vmatpush1.xpose.msra.mxu0 %v94
  %98 = vmatprep.subr.mxu0 0.0
  %99 = vmatpush1.xpose.msra.mxu0 %v91
  %100 = vmatprep.subr.mxu0 0.0
  %101 = vmatpush1.xpose.msra.mxu0 %v88
  %102 = vmatprep.subr.mxu0 0.0
  %103 = vmatpush1.xpose.msra.mxu0 %v85
  %104 = vmatprep.subr.mxu0 0.0
  %105 = vmatpush1.xpose.msra.mxu0 %v82
  %106 = vmatprep.subr.mxu0 0.0
  %107 = vmatpush1.xpose.msra.mxu0 %v79
  %108 = vmatprep.subr.mxu0 0.0
  %109 = vmatpush1.xpose.msra.mxu0 %v76
  %110 = vmatprep.subr.mxu0 0.0
  %111 = vmatpush1.xpose.msra.mxu0 %v73
  %112 = vmatprep.subr.mxu0 0.0
  %113 = vmatpush1.xpose.msra.mxu0 %v70
  %114 = vmatprep.subr.mxu0 0.0
  %115 = vmatpush1.xpose.msra.mxu0 %v67
  %116 = vmatprep.subr.mxu0 0.0
  %117 = vmatpush1.xpose.msra.mxu0 %v64
  %118 = vmatprep.subr.mxu0 0.0
  %119 = vmatpush1.xpose.msra.mxu0 %v61
  %120 = vmatprep.subr.mxu0 0.0
  %121 = vmatpush1.xpose.msra.mxu0 %v58
  %122 = vmatprep.subr.mxu0 0.0
  %123 = vmatpush1.xpose.msra.mxu0 %v55
  %124 = vmatprep.subr.mxu0 0.0
  %125 = vmatpush1.xpose.msra.mxu0 %v52
  %126 = vmatprep.subr.mxu0 0.0
  %127 = vmatpush1.xpose.msra.mxu0 %v49
  %128 = vmatprep.subr.mxu0 0.0
  %129 = vmatpush2.xpose.msra.mxu0 0.0
  %130 = vmatprep.subr.mxu0 0.0
  %131 = vmatpush2.xpose.msra.mxu0 0.0
  %132 = vmatprep.subr.mxu0 0.0
  %133 = vmatpush2.xpose.msra.mxu0 0.0
  %134 = vmatprep.subr.mxu0 0.0
  %135 = vmatpush2.xpose.msra.mxu0 0.0
  %136 = vmatprep.subr.mxu0 0.0
  %137 = vmatpush2.xpose.msra.mxu0 0.0
  %138 = vmatprep.subr.mxu0 0.0
  %139 = vmatpush2.xpose.msra.mxu0 0.0
  %140 = vmatprep.subr.mxu0 0.0
  %141 = vmatpush2.xpose.msra.mxu0 0.0
  %142 = vmatprep.subr.mxu0 0.0
  %143 = vmatpush2.xpose.msra.mxu0 0.0
  %144 = vmatprep.subr.mxu0 0.0
  %145 = vmatpush2.xpose.msra.mxu0 0.0
  %146 = vmatprep.subr.mxu0 0.0
  %147 = vmatpush2.xpose.msra.mxu0 0.0
  %148 = vmatprep.subr.mxu0 0.0
  %149 = vmatpush2.xpose.msra.mxu0 0.0
  %150 = vmatprep.subr.mxu0 0.0
  %151 = vmatpush2.xpose.msra.mxu0 0.0
  %152 = vmatprep.subr.mxu0 0.0
  %153 = vmatpush2.xpose.msra.mxu0 0.0
  %154 = vmatprep.subr.mxu0 0.0
  %155 = vmatpush2.xpose.msra.mxu0 0.0
  %156 = vmatprep.subr.mxu0 0.0
  %157 = vmatpush2.xpose.msra.mxu0 0.0
  %158 = vmatprep.subr.mxu0 0.0
  %159 = vmatpush2.xpose.msra.mxu0 0.0
  %160 = vmatprep.mubr.f32.mxu0 0.0
  %161 = vmatmul.mubr.f32.gmra.mxu0 %v46
  %v162 = vpop.f32.mrf.mxu0
  %v163 = vadd.f32 %v42, %v162
  %v164 = vpop.f32.mrf.mxu0
  %165 = vdwg.mxu0
  %v166 = vmax.f32 %v163, 0.0
  %v167 = vld [vmem:[%s3] sm:$0xff]
  %169 = vset.pattern.permute.xlu0 0
  %170 = vperm.xlu0 %169, %v167
  %v171 = vpop.permute.xlu0 %170
  %v173 = vmul.f32 %v166, %v171
  %v174 = vrot.slane %v173, 4
  %v175 = vadd.f32 %v173, %v174
  %v176 = vrot.slane %v175, 2
  %v177 = vadd.f32 %v175, %v176
  %v178 = vrot.slane %v177, 1
  %v179 = vadd.f32 %v177, %v178
  %s180 = sld [smem:[#allocation2]]
  %v181 = vstv %s180
  %v182 = vadd.f32 %v179, %v181
  %v183 = vsub.f32 0.0, %v182
  %v184 = vmul.f32 %v183, 1.442695
  %v185 = vpow.pop %v184
  %v186 = vadd.f32 %v185, 1.0
  %v187 = vrcp.pop %v186
  %v188 = vmul.f32 1.0, %v187
  %189 = vst [vmem:[%s5] sm:$0x1] %v188
  // Predicated region
  $region22: #{neural_forward.1} parent=0 // pred_check
    _
  $region23: #{neural_forward.1} parent=0 // pred_check_branch
    %191 = sbr.rel (0) target = $region25
  $region24: #{neural_forward.1} parent=0 // pred_region
    _
  $region25: #{neural_forward.1} parent=0 // pred_fallthru
    _
  // Predicated region
  $region26: #{neural_forward.1} parent=0 // pred_check
    _
  $region27: #{neural_forward.1} parent=0 // pred_check_branch
    %193 = sbr.rel (0) target = $region29
  $region28: #{neural_forward.1} parent=0 // pred_region
    _
  $region29: #{neural_forward.1} parent=0 // pred_fallthru
    _

</llo_original>
